<compile_context>
chip_gen: v5e
topology: v5e:2x2
jax: 0.10.0
libtpu: 0.0.40
codegen_flags: <defaults>
</compile_context>

<pallas_src>
import functools

import jax
import jax.numpy as jnp
from jax.experimental import pallas as pl
from jax.experimental.pallas import tpu as pltpu


def _pow_int(x, p):
    """x ** p for a static non-negative integer p via repeated multiply (VPU only)."""
    if p == 0:
        return jnp.ones_like(x)
    result = None
    base = x
    while p > 0:
        if p & 1:
            result = base if result is None else result * base
        p >>= 1
        if p:
            base = base * base
    return result


def _focal_loss_kernel(logits_ref, targets_ref, alpha_ref, out_ref, *, gamma):
    x = logits_ref[...].astype(jnp.float32)   # (TN, C) -- cast bf16/f16 -> f32 in VMEM
    t = targets_ref[...]                      # (TN, 1) int32; -1 marks padded/garbage rows
    af = alpha_ref[...]                       # (TN, 1) f32, pre-gathered alpha[target]

    tn, c = x.shape
    col = jax.lax.broadcasted_iota(jnp.int32, (tn, c), 1)
    onehot = col == t                         # one-hot via iota compare (no gather)

    # Numerically stable logsumexp, single pass over the class axis.
    m = jnp.max(x, axis=-1, keepdims=True)                        # (TN, 1)
    sumexp = jnp.sum(jnp.exp(x - m), axis=-1, keepdims=True)      # (TN, 1)
    tgt_logit = jnp.sum(jnp.where(onehot, x, 0.0), axis=-1, keepdims=True)

    # ce clamped >= 0 kills tiny-negative fp rounding; pt from exp(-ce) (EUP, (TN,1)).
    ce = jnp.maximum((m - tgt_logit) + jnp.log(sumexp), 0.0)
    pt = jnp.exp(-ce)
    d = jnp.maximum(1.0 - pt, 0.0)

    g = float(gamma)
    if g.is_integer() and 0 <= g <= 32:
        dg = _pow_int(d, int(g))          # integer gamma: pure VPU multiplies
    else:
        dg = d ** g                       # d >= 0 so float pow is NaN-safe for g > 0

    # Rows past N (ragged last block) carry garbage logits that may turn ce into
    # NaN; they have t == -1 and are selected out here (where blocks the NaN).
    valid = t >= 0
    focal = jnp.where(valid, af * dg * ce, 0.0)   # (TN, 1)
    part = jnp.sum(focal)                         # per-tile partial sum (scalar)

    # Lane-dense (8, 128) partial block (unmasked vst); wrapper reads element [0, 0].
    out_ref[...] = jnp.full(out_ref.shape, part, dtype=out_ref.dtype)


def focal_loss(logits, targets, alpha=None, gamma=2.0, reduction="mean"):
    """logits: (N, C) float (f32/bf16); targets: (N,) int; alpha: (C,) or None."""
    n, c = logits.shape
    itemsize = jnp.dtype(logits.dtype).itemsize
    c_lanes = max(128, ((c + 127) // 128) * 128)   # lane-padded VMEM width of a row

    # Row tile sized on the *in-kernel f32 working set*, not the raw HBM block:
    #   2 double-buffered input buffers            : 2 * c_lanes * itemsize
    #   ~4 full-width f32 temps (x, e, iota, sel)  : 4 * c_lanes * 4
    #   targets + alpha (TN,1) blocks, 2 bufs each : 4 * 128 * 4
    bytes_per_row = 2 * c_lanes * itemsize + 4 * c_lanes * 4 + 4 * 512
    budget = 32 * 1024 * 1024                      # working-set target (< vmem limit)
    n8 = ((n + 7) // 8) * 8
    tn = max(8, min((budget // bytes_per_row) // 8 * 8, n8))
    # v7x megacore: if one tile would cover everything, split so both TCs get work.
    if n8 > 8 and tn >= n8:
        tn = max(8, ((n8 // 2 + 7) // 8) * 8)
    num_tiles = -(-n // tn)                        # cdiv; last block may be ragged
    n_pad = num_tiles * tn

    # Logits are NOT padded/copied (no extra HBM pass). Only the tiny per-row side
    # inputs are padded; padded rows get target = -1 (masked in-kernel).
    targets_p = jnp.full((n_pad, 1), -1, dtype=jnp.int32)
    targets_p = targets_p.at[:n, 0].set(targets.astype(jnp.int32))
    if alpha is None:
        alpha_rows = jnp.ones((n,), dtype=jnp.float32)
    else:
        alpha_rows = alpha.astype(jnp.float32)[targets.astype(jnp.int32)]
    alpha_p = jnp.zeros((n_pad, 1), dtype=jnp.float32)
    alpha_p = alpha_p.at[:n, 0].set(alpha_rows)

    out = pl.pallas_call(
        functools.partial(_focal_loss_kernel, gamma=float(gamma)),
        out_shape=jax.ShapeDtypeStruct((num_tiles * 8, 128), jnp.float32),
        grid_spec=pltpu.PrefetchScalarGridSpec(
            num_scalar_prefetch=0,
            grid=(num_tiles,),
            in_specs=[
                pl.BlockSpec((tn, c), lambda i: (i, 0)),     # last dim == full C
                pl.BlockSpec((tn, 1), lambda i: (i, 0)),
                pl.BlockSpec((tn, 1), lambda i: (i, 0)),
            ],
            out_specs=pl.BlockSpec((8, 128), lambda i: (i, 0)),
        ),
        compiler_params=pltpu.CompilerParams(
            dimension_semantics=("parallel",),   # per-tile partials -> megacore-shardable
            vmem_limit_bytes=48 * 1024 * 1024,   # safe on v5e/v6e (128 MiB) and v7x (64 MiB)
        ),
    )(logits, targets_p, alpha_p)

    partials = out.reshape(num_tiles, 8, 128)[:, 0, 0]
    total = jnp.sum(partials)

    if reduction == "mean":
        return total / jnp.float32(n)            # divide by *original* N
    elif reduction == "sum":
        return total
    else:
        # TODO(synk): reduction='none' (per-sample (N,) output) not implemented.
        raise NotImplementedError("reduction must be 'mean' or 'sum'")


def focal_loss_ref(logits, targets, alpha=None, gamma=2.0, reduction="mean"):
    """Pure-JAX reference matching the PyTorch FocalLoss forward."""
    x = logits.astype(jnp.float32)
    lse = jax.nn.logsumexp(x, axis=-1)
    tgt = jnp.take_along_axis(x, targets[:, None].astype(jnp.int32), axis=-1)[:, 0]
    ce = lse - tgt
    pt = jnp.exp(-ce)
    af = alpha[targets].astype(jnp.float32) if alpha is not None else 1.0
    focal = af * (1.0 - pt) ** gamma * ce
    return jnp.mean(focal) if reduction == "mean" else jnp.sum(focal)


if __name__ == "__main__":
    key = jax.random.PRNGKey(0)
    k1, k2, k3, k4 = jax.random.split(key, 4)

    # Case 1: f32 logits, per-class alpha, reduction='mean' (even row count).
    N, C = 16, 8
    logits = jax.random.normal(k1, (N, C), dtype=jnp.float32)
    targets = jax.random.randint(k2, (N,), 0, C, dtype=jnp.int32)
    alpha = jnp.linspace(0.5, 1.5, C, dtype=jnp.float32)
    out = focal_loss(logits, targets, alpha, gamma=2.0)
    jax.block_until_ready(out)
    ref = focal_loss_ref(logits, targets, alpha, gamma=2.0)
    assert jnp.allclose(out, ref, rtol=1e-5, atol=1e-6), (out, ref)

    # Case 2: bf16 logits streamed from HBM, alpha=None, ragged N (exercises the
    # partial last row block + in-kernel row masking), reduction='sum'.
    N2, C2 = 13, 10
    logits2 = jax.random.normal(k3, (N2, C2), dtype=jnp.float32)
    targets2 = jax.random.randint(k4, (N2,), 0, C2, dtype=jnp.int32)
    out2 = focal_loss(logits2.astype(jnp.bfloat16), targets2, None,
                      gamma=2.0, reduction="sum")
    jax.block_until_ready(out2)
    ref2 = focal_loss_ref(logits2.astype(jnp.bfloat16), targets2, None,
                          gamma=2.0, reduction="sum")
    assert jnp.allclose(out2, ref2, rtol=1e-4, atol=1e-5), (out2, ref2)

    print("KERNEL_OK")
</pallas_src>

<mosaic_0001>
module attributes {stable_mosaic.version = 11 : i64} {
  func.func @_focal_loss_kernel(%arg0: i32, %arg1: memref<8x8xf32, #tpu.memory_space<vmem>>, %arg2: memref<8x1xi32, #tpu.memory_space<vmem>>, %arg3: memref<8x1xf32, #tpu.memory_space<vmem>>, %arg4: memref<8x128xf32, #tpu.memory_space<vmem>>) attributes {dimension_semantics = [#tpu.dimension_semantics<parallel>], iteration_bounds = array<i64: 2>, scalar_prefetch = 0 : i64, scratch_operands = 0 : i64, tpu.core_type = #tpu.core_type<tc>, window_params = [{transform_indices = @transform_0, window_bounds = array<i64: 8, 8>}, {transform_indices = @transform_1, window_bounds = array<i64: 8, 1>}, {transform_indices = @transform_2, window_bounds = array<i64: 8, 1>}, {transform_indices = @transform_3, window_bounds = array<i64: 8, 128>}]} {
    %c0 = arith.constant 0 : index
    %c0_0 = arith.constant 0 : index
    %0 = vector.load %arg1[%c0, %c0_0] : memref<8x8xf32, #tpu.memory_space<vmem>>, vector<8x8xf32>
    %c0_1 = arith.constant 0 : index
    %c0_2 = arith.constant 0 : index
    %1 = vector.load %arg2[%c0_1, %c0_2] : memref<8x1xi32, #tpu.memory_space<vmem>>, vector<8x1xi32>
    %c0_3 = arith.constant 0 : index
    %c0_4 = arith.constant 0 : index
    %2 = vector.load %arg3[%c0_3, %c0_4] : memref<8x1xf32, #tpu.memory_space<vmem>>, vector<8x1xf32>
    %3 = tpu.iota {dimensions = array<i32: 1>} : vector<8x8xi32>
    %4 = vector.broadcast %1 : vector<8x1xi32> to vector<8x8xi32>
    %5 = arith.cmpi eq, %3, %4 : vector<8x8xi32>
    %cst = arith.constant dense<0xFF800000> : vector<8xf32>
    %6 = vector.multi_reduction <maximumf>, %0, %cst [1] : vector<8x8xf32> to vector<8xf32>
    %7 = vector.shape_cast %6 : vector<8xf32> to vector<8x1xf32>
    %8 = vector.broadcast %7 : vector<8x1xf32> to vector<8x8xf32>
    %9 = arith.subf %0, %8 : vector<8x8xf32>
    %10 = math.exp %9 : vector<8x8xf32>
    %cst_5 = arith.constant dense<0.000000e+00> : vector<8xf32>
    %11 = vector.multi_reduction <add>, %10, %cst_5 [1] : vector<8x8xf32> to vector<8xf32>
    %12 = vector.shape_cast %11 : vector<8xf32> to vector<8x1xf32>
    %cst_6 = arith.constant 0.000000e+00 : f32
    %13 = vector.broadcast %cst_6 : f32 to vector<8x8xf32>
    %14 = arith.select %5, %0, %13 : vector<8x8xi1>, vector<8x8xf32>
    %cst_7 = arith.constant dense<0.000000e+00> : vector<8xf32>
    %15 = vector.multi_reduction <add>, %14, %cst_7 [1] : vector<8x8xf32> to vector<8xf32>
    %16 = vector.shape_cast %15 : vector<8xf32> to vector<8x1xf32>
    %17 = arith.subf %7, %16 : vector<8x1xf32>
    %18 = math.log %12 : vector<8x1xf32>
    %19 = arith.addf %17, %18 : vector<8x1xf32>
    %cst_8 = arith.constant 0.000000e+00 : f32
    %20 = vector.broadcast %cst_8 : f32 to vector<8x1xf32>
    %21 = arith.maximumf %19, %20 : vector<8x1xf32>
    %cst_9 = arith.constant 0.000000e+00 : f32
    %22 = vector.broadcast %cst_9 : f32 to vector<8x1xf32>
    %23 = arith.subf %22, %21 : vector<8x1xf32>
    %24 = math.exp %23 : vector<8x1xf32>
    %cst_10 = arith.constant 1.000000e+00 : f32
    %25 = vector.broadcast %cst_10 : f32 to vector<8x1xf32>
    %26 = arith.subf %25, %24 : vector<8x1xf32>
    %cst_11 = arith.constant 0.000000e+00 : f32
    %27 = vector.broadcast %cst_11 : f32 to vector<8x1xf32>
    %28 = arith.maximumf %26, %27 : vector<8x1xf32>
    %29 = arith.mulf %28, %28 : vector<8x1xf32>
    %c0_i32 = arith.constant 0 : i32
    %30 = vector.broadcast %c0_i32 : i32 to vector<8x1xi32>
    %31 = arith.cmpi sge, %1, %30 : vector<8x1xi32>
    %32 = arith.mulf %2, %29 : vector<8x1xf32>
    %33 = arith.mulf %32, %21 : vector<8x1xf32>
    %cst_12 = arith.constant 0.000000e+00 : f32
    %34 = vector.broadcast %cst_12 : f32 to vector<8x1xf32>
    %35 = arith.select %31, %33, %34 : vector<8x1xi1>, vector<8x1xf32>
    %36 = vector.shape_cast %35 : vector<8x1xf32> to vector<1x8x1xf32>
    %cst_13 = arith.constant dense<0.000000e+00> : vector<1xf32>
    %37 = vector.multi_reduction <add>, %36, %cst_13 [1, 2] : vector<1x8x1xf32> to vector<1xf32>
    %38 = vector.shape_cast %37 : vector<1xf32> to vector<1x1x1xf32>
    %39 = vector.extract %38[0, 0, 0] : f32 from vector<1x1x1xf32>
    %40 = vector.broadcast %39 : f32 to vector<8x128xf32>
    %c0_14 = arith.constant 0 : index
    %c0_15 = arith.constant 0 : index
    %41 = vector.load %arg4[%c0_14, %c0_15] : memref<8x128xf32, #tpu.memory_space<vmem>>, vector<8x128xf32>
    tpu.vector_store %arg4[%c0_14, %c0_15], %40 {strides = array<i32>} : memref<8x128xf32, #tpu.memory_space<vmem>>, vector<8x128xf32>,
    return
  }
  func.func @transform_0(%arg0: i32) -> (i32, i32) {
    %c0_i32 = arith.constant 0 : i32
    %c0_i32_0 = arith.constant 0 : i32
    return %arg0, %c0_i32 : i32, i32
  }
  func.func @transform_1(%arg0: i32) -> (i32, i32) {
    %c0_i32 = arith.constant 0 : i32
    %c0_i32_0 = arith.constant 0 : i32
    return %arg0, %c0_i32 : i32, i32
  }
  func.func @transform_2(%arg0: i32) -> (i32, i32) {
    %c0_i32 = arith.constant 0 : i32
    %c0_i32_0 = arith.constant 0 : i32
    return %arg0, %c0_i32 : i32, i32
  }
  func.func @transform_3(%arg0: i32) -> (i32, i32) {
    %c0_i32 = arith.constant 0 : i32
    %c0_i32_0 = arith.constant 0 : i32
    return %arg0, %c0_i32 : i32, i32
  }
}

</mosaic_0001>

<llo_original>
// kernel: tpu_custom_call.1
$region0: #{tpu_custom_call.1}
  #allocation0 [shape = 'u32[]', space=smem, size = 0x4, offset = 0x4, fixed_abs, tag = 'smem constant byte address 0x4 - core index']
  #allocation1 [shape = 'u32[72,128]{1,0:T(1,128)}', space=vmem, size = 0x9000, scoped, tag = 'internal scratch']
  %s0 = inlined_call_operand.vmem [shape: f32[16,8], index: 0, kind: input, shape index: {}]
  %s1 = inlined_call_operand.vmem [shape: s32[16,1], index: 1, kind: input, shape index: {}]
  %s2 = inlined_call_operand.vmem [shape: f32[16,1], index: 2, kind: input, shape index: {}]
  %s3 = inlined_call_operand.hbm [shape: f32[16,128], index: 3, kind: output, shape index: {}]
  %s4 = sld [smem:[#allocation0]]
  $region45: #{tpu_custom_call.1} parent=0
    _
  %s6 = ssub.s32 1, %s4
  %s7 = scalar_select 0, %s6, %s4
  $region1: #{tpu_custom_call.1} parent=0
    #allocation2 [shape = 'u8[8192]{0}', space=vmem, size = 0x2000, scoped, tag = 'output window, operand 0']
    #allocation3 [shape = 's32[2]{0}', space=sflag, size = 0x8, scoped, tag = 'scoped memory for tpu_custom_call.1']
    %8 = vsyncpa [#allocation3], 0
    %s9 = scalar_lea.sflag [#allocation3], 1
    %10 = vsyncpa %s9, 0
    loop: start=0, step=1, limit=4
    $region2: #{tpu_custom_call.1} parent=1 // loop_pre_header
      _
    $region3: #{tpu_custom_call.1} parent=1 // loop_header
      %s12 = sphi 0, %s16
      %p13 = scmp.ge.s32.totalorder %s12, 4
      %s22 = sphi 0, %s24
      %s25 = sphi 0, %s22
      %s26 = sphi 0, %s25
      %s42 = sphi 0, %s26
      %s48 = sphi 0, %s50
      %s51 = sphi 0, %s48
      %s52 = sphi 0, %s51
      %s68 = sphi 0, %s52
      %s74 = sphi 0, %s76
      %s77 = sphi 0, %s74
      %s78 = sphi 0, %s77
      %s94 = sphi 0, %s78
      %s100 = sphi 0, %s102
      %s103 = sphi 0, %s100
      %s104 = sphi 0, %s103
      %s120 = sphi 0, %s104
    $region4: #{tpu_custom_call.1} parent=1 // loop_header_branch
      %15 = sbr.rel (%p13) target = $region8
    $region5: #{tpu_custom_call.1} parent=1 // loop_body
      %s17 = ssub.s32 %s12, 1
      %s18 = ssub.s32 %s12, 2
      %s19 = sadd.s32 %s12, 1
      %s20 = ssub.s32 %s12, %s19
      %p21 = scmp.eq.s32.totalorder %s20, 0
      %s23 = sadd.s32 %s22, 1
      %s24 = scalar_select %p21, %s22, %s23
      %p27 = pneg %p21
      %p28 = scmp.eq.s32.totalorder %s12, 1
      %p29 = por %p27, %p28
      %p30 = scmp.ne.s32.totalorder %s22, %s25
      %p31 = scmp.eq.s32.totalorder %s12, 0
      %p32 = por %p30, %p31
      %p33 = scmp.ne.s32.totalorder %s22, %s25
      %p34 = scmp.eq.s32.totalorder %s17, 1
      %p35 = por %p33, %p34
      %p36 = scmp.ne.s32.totalorder %s25, %s26
      %p37 = scmp.eq.s32.totalorder %s17, 0
      %p38 = por %p36, %p37
      %p39 = scmp.ne.s32.totalorder %s25, %s26
      %p40 = scmp.eq.s32.totalorder %s18, 1
      %p41 = por %p39, %p40
      %p43 = scmp.ne.s32.totalorder %s26, %s42
      %p44 = scmp.eq.s32.totalorder %s18, 0
      %p45 = por %p43, %p44
      %s46 = ssub.s32 %s12, %s19
      %p47 = scmp.eq.s32.totalorder %s46, 0
      %s49 = sadd.s32 %s48, 1
      %s50 = scalar_select %p47, %s48, %s49
      %p53 = pneg %p47
      %p54 = scmp.eq.s32.totalorder %s12, 1
      %p55 = por %p53, %p54
      %p56 = scmp.ne.s32.totalorder %s48, %s51
      %p57 = scmp.eq.s32.totalorder %s12, 0
      %p58 = por %p56, %p57
      %p59 = scmp.ne.s32.totalorder %s48, %s51
      %p60 = scmp.eq.s32.totalorder %s17, 1
      %p61 = por %p59, %p60
      %p62 = scmp.ne.s32.totalorder %s51, %s52
      %p63 = scmp.eq.s32.totalorder %s17, 0
      %p64 = por %p62, %p63
      %p65 = scmp.ne.s32.totalorder %s51, %s52
      %p66 = scmp.eq.s32.totalorder %s18, 1
      %p67 = por %p65, %p66
      %p69 = scmp.ne.s32.totalorder %s52, %s68
      %p70 = scmp.eq.s32.totalorder %s18, 0
      %p71 = por %p69, %p70
      %s72 = ssub.s32 %s12, %s19
      %p73 = scmp.eq.s32.totalorder %s72, 0
      %s75 = sadd.s32 %s74, 1
      %s76 = scalar_select %p73, %s74, %s75
      %p79 = pneg %p73
      %p80 = scmp.eq.s32.totalorder %s12, 1
      %p81 = por %p79, %p80
      %p82 = scmp.ne.s32.totalorder %s74, %s77
      %p83 = scmp.eq.s32.totalorder %s12, 0
      %p84 = por %p82, %p83
      %p85 = scmp.ne.s32.totalorder %s74, %s77
      %p86 = scmp.eq.s32.totalorder %s17, 1
      %p87 = por %p85, %p86
      %p88 = scmp.ne.s32.totalorder %s77, %s78
      %p89 = scmp.eq.s32.totalorder %s17, 0
      %p90 = por %p88, %p89
      %p91 = scmp.ne.s32.totalorder %s77, %s78
      %p92 = scmp.eq.s32.totalorder %s18, 1
      %p93 = por %p91, %p92
      %p95 = scmp.ne.s32.totalorder %s78, %s94
      %p96 = scmp.eq.s32.totalorder %s18, 0
      %p97 = por %p95, %p96
      %s98 = ssub.s32 %s12, %s19
      %p99 = scmp.eq.s32.totalorder %s98, 0
      %s101 = sadd.s32 %s100, 1
      %s102 = scalar_select %p99, %s100, %s101
      %p105 = pneg %p99
      %p106 = scmp.eq.s32.totalorder %s12, 1
      %p107 = por %p105, %p106
      %p108 = scmp.ne.s32.totalorder %s100, %s103
      %p109 = scmp.eq.s32.totalorder %s12, 0
      %p110 = por %p108, %p109
      %p111 = scmp.ne.s32.totalorder %s100, %s103
      %p112 = scmp.eq.s32.totalorder %s17, 1
      %p113 = por %p111, %p112
      %p114 = scmp.ne.s32.totalorder %s103, %s104
      %p115 = scmp.eq.s32.totalorder %s17, 0
      %p116 = por %p114, %p115
      %p117 = scmp.ne.s32.totalorder %s103, %s104
      %p118 = scmp.eq.s32.totalorder %s18, 1
      %p119 = por %p117, %p118
      %p121 = scmp.ne.s32.totalorder %s104, %s120
      %p122 = scmp.eq.s32.totalorder %s18, 0
      %p123 = por %p121, %p122
      %p124 = scmp.le.s32.totalorder 1, %s12
      %p125 = scmp.lt.s32.totalorder %s12, 3
      %p126 = pnand %p124, %p125
      %p127 = pneg %p126
      // Predicated region
      $region9: #{tpu_custom_call.1} parent=5 // pred_check
        _
      $region10: #{tpu_custom_call.1} parent=5 // pred_check_branch
        %129 = sbr.rel (%p126) target = $region12
      $region11: #{tpu_custom_call.1} parent=5 // pred_region
        %s130 = ssub.s32 %s12, 1
      $region12: #{tpu_custom_call.1} parent=5 // pred_fallthru
        _
      %p131 = scmp.lt.s32.totalorder %s12, 2
      // Predicated region
      $region13: #{tpu_custom_call.1} parent=5 // pred_check
        %p132 = pneg %p131
      $region14: #{tpu_custom_call.1} parent=5 // pred_check_branch
        %134 = sbr.rel (%p132) target = $region16
      $region15: #{tpu_custom_call.1} parent=5 // pred_region
        // Predicated region
        $region17: #{tpu_custom_call.1} parent=15 // pred_check
          %p135 = pneg %p32
        $region18: #{tpu_custom_call.1} parent=15 // pred_check_branch
          %137 = sbr.rel (%p135) target = $region20
        $region19: #{tpu_custom_call.1} parent=15 // pred_region
          %p138 = scmp.lt.s32.totalorder %s12, 1
          %s139 = scalar_select %p138, %s12, 1
          %s140 = smul.addr %s139, 8
          %s141 = scalar_lea.vmem %s0, %s140
        $region20: #{tpu_custom_call.1} parent=15 // pred_fallthru
          _
        // Predicated region
        $region21: #{tpu_custom_call.1} parent=15 // pred_check
          %p142 = pneg %p58
        $region22: #{tpu_custom_call.1} parent=15 // pred_check_branch
          %144 = sbr.rel (%p142) target = $region24
        $region23: #{tpu_custom_call.1} parent=15 // pred_region
          %p145 = scmp.lt.s32.totalorder %s12, 1
          %s146 = scalar_select %p145, %s12, 1
          %s147 = smul.addr %s146, 8
          %s148 = scalar_lea.vmem %s1, %s147
        $region24: #{tpu_custom_call.1} parent=15 // pred_fallthru
          _
        // Predicated region
        $region25: #{tpu_custom_call.1} parent=15 // pred_check
          %p149 = pneg %p84
        $region26: #{tpu_custom_call.1} parent=15 // pred_check_branch
          %151 = sbr.rel (%p149) target = $region28
        $region27: #{tpu_custom_call.1} parent=15 // pred_region
          %p152 = scmp.lt.s32.totalorder %s12, 1
          %s153 = scalar_select %p152, %s12, 1
          %s154 = smul.addr %s153, 8
          %s155 = scalar_lea.vmem %s2, %s154
        $region28: #{tpu_custom_call.1} parent=15 // pred_fallthru
          _
      $region16: #{tpu_custom_call.1} parent=5 // pred_fallthru
        _
      %p156 = scmp.le.s32.totalorder 1, %s12
      %p157 = scmp.lt.s32.totalorder %s12, 3
      %p158 = pnand %p156, %p157
      %p159 = pneg %p158
      // Predicated region
      $region29: #{tpu_custom_call.1} parent=5 // pred_check
        _
      $region30: #{tpu_custom_call.1} parent=5 // pred_check_branch
        %161 = sbr.rel (%p158) target = $region32
      $region31: #{tpu_custom_call.1} parent=5 // pred_region
        %s162 = ssub.s32 %s12, 1
        %p163 = scmp.lt.s32.totalorder %s17, 1
        %s164 = scalar_select %p163, %s17, 1
        %s165 = smul.addr %s164, 8
        %s166 = scalar_lea.vmem %s0, %s165
        %p167 = pneg %p38
        %p168 = pneg %p35
        %p169 = scmp.lt.s32.totalorder %s17, 1
        %s170 = scalar_select %p169, %s17, 1
        %s171 = smul.addr %s170, 8
        %s172 = scalar_lea.vmem %s1, %s171
        %p173 = pneg %p64
        %p174 = pneg %p61
        %p175 = scmp.lt.s32.totalorder %s17, 1
        %s176 = scalar_select %p175, %s17, 1
        %s177 = smul.addr %s176, 8
        %s178 = scalar_lea.vmem %s2, %s177
        %p179 = pneg %p90
        %p180 = pneg %p87
        %p181 = pneg %p116
        %p182 = pneg %p113
        %s183 = sand.u32 %s103, 1
        %s184 = scalar_lea.sflag [#allocation3], %s183
        %s185 = sand.u32 %s103, 1
        %s186 = smul.addr %s185, 8
        %s187 = scalar_lea.vmem [#allocation2], %s186
        %p188 = scmp.lt.s32.totalorder %s17, 1
        %s189 = scalar_select %p188, %s17, 1
        %s190 = smul.addr %s189, 8
        %s191 = scalar_lea.vmem %s0, %s190
        %p192 = scmp.lt.s32.totalorder %s17, 1
        %s193 = scalar_select %p192, %s17, 1
        %s194 = smul.addr %s193, 8
        %s195 = scalar_lea.vmem %s1, %s194
        %p196 = scmp.lt.s32.totalorder %s17, 1
        %s197 = scalar_select %p196, %s17, 1
        %s198 = smul.addr %s197, 8
        %s199 = scalar_lea.vmem %s2, %s198
        %v200 = vld [vmem:[%s191] sm:$0xff]
        %v201 = vld [vmem:[%s195] sm:$0xff]
        %v202 = vld [vmem:[%s199] sm:$0xff]
        %v203 = vlaneseq
        %v204 = vand.u32 %v203, 127
        %205 = vset.pattern.permute.xlu0 0
        %206 = vperm.xlu0 %205, %v201
        %v207 = vpop.permute.xlu0 %206
        %vm208 = vcmp.eq.s32.totalorder %v204, %v207
        %vm209 = vcmask 64512
        %v210 = vsel %vm209, %v200, -inf
        %211 = vmax.xlane.f32.xlu0 %v210
        %v212 = vpop.xlane.xlu0 %211
        %v213 = vsub.f32 %v200, %v212
        %v214 = vmul.f32 %v213, 1.442695
        %v215 = vpow.pop %v214
        %v216 = vsel %vm209, %v215, 0.0
        %217 = vadd.xlane.f32.xlu0 %v216
        %v218 = vpop.xlane.xlu0 %217
        %v219 = vsel %vm208, %v200, 0.0
        %v220 = vsel %vm209, %v219, 0.0
        %221 = vadd.xlane.f32.xlu0 %v220
        %v222 = vpop.xlane.xlu0 %221
        %v223 = vsub.f32 %v212, %v222
        %v224 = vlog2.pop %v218
        %v225 = vmul.f32 %v224, 0.6931472
        %v226 = vadd.f32 %v223, %v225
        %v227 = vmax.f32 %v226, 0.0
        %v228 = vsub.f32 0.0, %v227
        %v229 = vmul.f32 %v228, 1.442695
        %v230 = vpow.pop %v229
        %v231 = vsub.f32 1.0, %v230
        %v232 = vmax.f32 %v231, 0.0
        %v233 = vmul.f32 %v232, %v232
        %vm234 = vcmp.ge.s32.totalorder %v201, 0
        %v235 = vmul.f32 %v202, %v233
        %v236 = vmul.f32 %v235, %v227
        %v237 = vsel %vm234, %v236, 0.0
        %vm238 = vcmask 7168
        %v239 = vsel %vm238, %v237, 0.0
        %240 = vadd.xlane.f32.xlu0 %v239
        %v241 = vpop.xlane.xlu0 %240
        %v242 = vrot.slane %v241, 4
        %v243 = vadd.f32 %v241, %v242
        %v244 = vrot.slane %v243, 2
        %v245 = vadd.f32 %v243, %v244
        %v246 = vrot.slane %v245, 1
        %v247 = vadd.f32 %v245, %v246
        %s248 = vtos %v247
        %v249 = vstv %s248
        %250 = vst [vmem:[%s187] sm:$0xff] %v249
        %s251 = sand.u32 %s103, 1
        %s252 = scalar_lea.sflag [#allocation3], %s251
        %s253 = sand.u32 %s103, 1
        %s254 = smul.addr %s253, 8
        %s255 = scalar_lea.vmem [#allocation2], %s254
        // Predicated region
        $region33: #{tpu_custom_call.1} parent=31 // pred_check
          %p256 = pneg %p113
        $region34: #{tpu_custom_call.1} parent=31 // pred_check_branch
          %258 = sbr.rel (%p256) target = $region36
        $region35: #{tpu_custom_call.1} parent=31 // pred_region
          %260 = vsyncadd %s252, 0
          %s261 = smul.addr %s17, 8
          %s262 = scalar_lea.hbm %s3, %s261
          %s264 = sshll.u32 %s255, 4
          %s265 = int_to_ptr.vmem [resolvable:$true] %s264
          %s266 = sshll.u32 %s262, 4
          %s267 = int_to_ptr.hbm [resolvable:$true] %s266
          %269 = dma.vmem_to_hbm [thread:$0]  %s265, 128, %s267, %s252
        $region36: #{tpu_custom_call.1} parent=31 // pred_fallthru
          _
      $region32: #{tpu_custom_call.1} parent=5 // pred_fallthru
        _
      %p270 = scmp.le.s32.totalorder 2, %s12
      // Predicated region
      $region37: #{tpu_custom_call.1} parent=5 // pred_check
        %p271 = pneg %p270
      $region38: #{tpu_custom_call.1} parent=5 // pred_check_branch
        %273 = sbr.rel (%p271) target = $region40
      $region39: #{tpu_custom_call.1} parent=5 // pred_region
        %s274 = ssub.s32 %s12, 2
        // Predicated region
        $region41: #{tpu_custom_call.1} parent=39 // pred_check
          %p275 = pneg %p119
        $region42: #{tpu_custom_call.1} parent=39 // pred_check_branch
          %277 = sbr.rel (%p275) target = $region44
        $region43: #{tpu_custom_call.1} parent=39 // pred_region
          %s278 = sand.u32 %s104, 1
          %s279 = scalar_lea.sflag [#allocation3], %s278
          %s280 = sand.u32 %s104, 1
          %s281 = smul.addr %s280, 8
          %s282 = scalar_lea.vmem [#allocation2], %s281
          %284 = dma.done %s279, 128
        $region44: #{tpu_custom_call.1} parent=39 // pred_fallthru
          _
      $region40: #{tpu_custom_call.1} parent=5 // pred_fallthru
        _
    $region6: #{tpu_custom_call.1} parent=1 // loop_footer
      %s16 = sadd.s32 1, %s12
    $region7: #{tpu_custom_call.1} parent=1 // loop_footer_branch
      %11 = sbr.rel target = $region3
    $region8: #{tpu_custom_call.1} parent=1 // loop_exit
      _
    %285 = vsyncpa [#allocation3], 1
    %s286 = scalar_lea.sflag [#allocation3], 1
    %287 = vsyncpa %s286, 1

</llo_original>
